<compile_context>
chip_gen: v6e
topology: v6e:2x2x1
jax: 0.10.0
libtpu: 0.0.40
codegen_flags: <defaults>
</compile_context>

<pallas_src>
import jax
import jax.numpy as jnp
from jax.experimental import pallas as pl
from jax.experimental.pallas import tpu as pltpu


def _linear_add_kernel(x_ref, w_ref, b_ref, r_ref, o_ref):
    # x_ref : (M, K) f32   activations
    # w_ref : (K, N) f32   weight^T
    # b_ref : (1, N) f32   bias row (sublane-broadcast in the add)
    # r_ref : (M, N) f32   residual
    # o_ref : (M, N) f32   output
    acc = jnp.dot(x_ref[...], w_ref[...], preferred_element_type=jnp.float32)
    o_ref[...] = (r_ref[...] + b_ref[...] + acc).astype(o_ref.dtype)


@jax.jit
def linear_add(x2, w_t, b_row, x3):
    """y = x2 @ w_t + b + x3.

    x2   : (B, S, K) f32
    w_t  : (K, N)    f32  (weight^T, prepared once at init)
    b_row: (1, N)    f32  (bias reshaped once at init)
    x3   : (B, S, N) f32
    """
    B, S, K = x2.shape
    N = w_t.shape[1]
    M = B * S

    # These reshapes are free (bitcast-level) views; no padding, no dtype casts.
    x2_2d = x2.reshape(M, K)
    x3_2d = x3.reshape(M, N)

    out = pl.pallas_call(
        _linear_add_kernel,
        out_shape=jax.ShapeDtypeStruct((M, N), x3.dtype),
        in_specs=[
            pl.BlockSpec(memory_space=pltpu.MemorySpace.VMEM),  # x2
            pl.BlockSpec(memory_space=pltpu.MemorySpace.VMEM),  # W^T
            pl.BlockSpec(memory_space=pltpu.MemorySpace.VMEM),  # bias row
            pl.BlockSpec(memory_space=pltpu.MemorySpace.VMEM),  # residual
        ],
        out_specs=pl.BlockSpec(memory_space=pltpu.MemorySpace.VMEM),
    )(x2_2d, w_t, b_row, x3_2d)

    return out.reshape(B, S, N)


if __name__ == "__main__":
    IN_FEATURES = 10
    OUT_FEATURES = 100
    B, S = 1, 10  # matches the module's (1, 10, .) leading dims

    key = jax.random.PRNGKey(0)
    k_w, k_b, k_x2, k_x3 = jax.random.split(key, 4)

    # torch.nn.Linear-style init: U(-1/sqrt(K), 1/sqrt(K))
    bound = 1.0 / (IN_FEATURES ** 0.5)
    weight = jax.random.uniform(
        k_w, (OUT_FEATURES, IN_FEATURES), jnp.float32, -bound, bound)
    bias = jax.random.uniform(k_b, (OUT_FEATURES,), jnp.float32, -bound, bound)

    # Static parameter prep: done once, outside the per-call jitted wrapper.
    w_t = jnp.asarray(weight.T)                       # (K, N)
    b_row = jnp.asarray(bias.reshape(1, OUT_FEATURES))  # (1, N)

    # forward(): linear input last dim = 10, residual last dim = 100.
    x2 = jax.random.normal(k_x2, (B, S, IN_FEATURES), jnp.float32)
    x3 = jax.random.normal(k_x3, (B, S, OUT_FEATURES), jnp.float32)

    y = linear_add(x2, w_t, b_row, x3)
    jax.block_until_ready(y)

    # Reference check in plain JAX
    ref = x2 @ weight.T + bias + x3
    assert y.shape == (B, S, OUT_FEATURES)
    assert jnp.allclose(y, ref, atol=1e-5, rtol=1e-5)

    print("KERNEL_OK")
</pallas_src>

<mosaic_0001>
module attributes {stable_mosaic.version = 11 : i64} {
  func.func @_linear_add_kernel(%arg0: memref<10x10xf32, #tpu.memory_space<vmem>>, %arg1: memref<10x100xf32, #tpu.memory_space<vmem>>, %arg2: memref<1x100xf32, #tpu.memory_space<vmem>>, %arg3: memref<10x100xf32, #tpu.memory_space<vmem>>, %arg4: memref<10x100xf32, #tpu.memory_space<vmem>>) attributes {dimension_semantics = [], scalar_prefetch = 0 : i64, scratch_operands = 0 : i64, tpu.core_type = #tpu.core_type<tc>} {
    %c0 = arith.constant 0 : index
    %c0_0 = arith.constant 0 : index
    %0 = vector.load %arg0[%c0, %c0_0] : memref<10x10xf32, #tpu.memory_space<vmem>>, vector<10x10xf32>
    %c0_1 = arith.constant 0 : index
    %c0_2 = arith.constant 0 : index
    %1 = vector.load %arg1[%c0_1, %c0_2] : memref<10x100xf32, #tpu.memory_space<vmem>>, vector<10x100xf32>
    %cst = arith.constant dense<0.000000e+00> : vector<10x100xf32>
    %2 = tpu.matmul %0, %1, %cst {dimension_numbers = #tpu.dot_dimension_numbers<[1], [0], [0], [1], [0, 0, 1, 1], [], []>} : vector<10x10xf32>, vector<10x100xf32>, vector<10x100xf32> -> vector<10x100xf32>
    %c0_3 = arith.constant 0 : index
    %c0_4 = arith.constant 0 : index
    %3 = vector.load %arg3[%c0_3, %c0_4] : memref<10x100xf32, #tpu.memory_space<vmem>>, vector<10x100xf32>
    %c0_5 = arith.constant 0 : index
    %c0_6 = arith.constant 0 : index
    %4 = vector.load %arg2[%c0_5, %c0_6] : memref<1x100xf32, #tpu.memory_space<vmem>>, vector<1x100xf32>
    %5 = vector.broadcast %4 : vector<1x100xf32> to vector<10x100xf32>
    %6 = arith.addf %3, %5 : vector<10x100xf32>
    %7 = arith.addf %6, %2 : vector<10x100xf32>
    %c0_7 = arith.constant 0 : index
    %c0_8 = arith.constant 0 : index
    %8 = vector.load %arg4[%c0_7, %c0_8] : memref<10x100xf32, #tpu.memory_space<vmem>>, vector<10x100xf32>
    tpu.vector_store %arg4[%c0_7, %c0_8], %7 {strides = array<i32>} : memref<10x100xf32, #tpu.memory_space<vmem>>, vector<10x100xf32>,
    return
  }
}

</mosaic_0001>

<llo_original>
// kernel: linear_add.1
$region0: #{linear_add.1}
  #allocation0 [shape = 'u32[]', space=smem, size = 0x4, offset = 0x4, fixed_abs, tag = 'smem constant byte address 0x4 - core index']
  #allocation1 [shape = 'u32[144,128]{1,0:T(1,128)}', space=vmem, size = 0x12000, scoped, tag = 'internal scratch']
  %s0 = inlined_call_operand.vmem [shape: f32[10,10], index: 0, kind: input, shape index: {}]
  %s1 = inlined_call_operand.vmem [shape: f32[10,100], index: 1, kind: input, shape index: {}]
  %s2 = inlined_call_operand.vmem [shape: f32[1,100], index: 2, kind: input, shape index: {}]
  %s3 = inlined_call_operand.vmem [shape: f32[10,100], index: 3, kind: input, shape index: {}]
  %s4 = inlined_call_operand.vmem [shape: f32[10,100], index: 4, kind: output, shape index: {}]
  %s5 = sld [smem:[#allocation0]]
  $region26: #{linear_add.1} parent=0
    _
  %s7 = ssub.s32 1, %s5
  %s8 = scalar_select 0, %s7, %s5
  // Predicated region
  $region2: #{linear_add.1} parent=0 // pred_check
    _
  $region3: #{linear_add.1} parent=0 // pred_check_branch
    %10 = sbr.rel (0) target = $region5
  $region4: #{linear_add.1} parent=0 // pred_region
    _
  $region5: #{linear_add.1} parent=0 // pred_fallthru
    _
  // Predicated region
  $region6: #{linear_add.1} parent=0 // pred_check
    _
  $region7: #{linear_add.1} parent=0 // pred_check_branch
    %12 = sbr.rel (0) target = $region9
  $region8: #{linear_add.1} parent=0 // pred_region
    _
  $region9: #{linear_add.1} parent=0 // pred_fallthru
    _
  // Predicated region
  $region10: #{linear_add.1} parent=0 // pred_check
    _
  $region11: #{linear_add.1} parent=0 // pred_check_branch
    %14 = sbr.rel (0) target = $region13
  $region12: #{linear_add.1} parent=0 // pred_region
    _
  $region13: #{linear_add.1} parent=0 // pred_fallthru
    _
  // Predicated region
  $region14: #{linear_add.1} parent=0 // pred_check
    _
  $region15: #{linear_add.1} parent=0 // pred_check_branch
    %16 = sbr.rel (0) target = $region17
  $region16: #{linear_add.1} parent=0 // pred_region
    _
  $region17: #{linear_add.1} parent=0 // pred_fallthru
    _
  %v17 = vld [vmem:[%s0] sm:$0xff]
  %v18 = vld [vmem:[%s0 + $0x8] sm:$0x3]
  %v19 = vld [vmem:[%s1] sm:$0xff]
  %v20 = vld [vmem:[%s1 + $0x8] sm:$0x3]
  %vm21 = vcmask 80896
  %v23 = vsel %vm21, %v17, 0
  %v26 = vsel %vm21, %v18, 0
  %vm28 = vcmask 1041408
  %v30 = vsel %vm28, %v20, 0
  %32 = vmatprep.subr.mxu0 0.0
  %33 = vmatpush1.msra.mxu0 0.0
  %34 = vmatprep.subr.mxu0 0.0
  %35 = vmatpush1.msra.mxu0 0.0
  %36 = vmatprep.subr.mxu0 0.0
  %37 = vmatpush1.msra.mxu0 0.0
  %38 = vmatprep.subr.mxu0 0.0
  %39 = vmatpush1.msra.mxu0 0.0
  %40 = vmatprep.subr.mxu0 0.0
  %41 = vmatpush1.msra.mxu0 0.0
  %42 = vmatprep.subr.mxu0 0.0
  %43 = vmatpush1.msra.mxu0 0.0
  %44 = vmatprep.subr.mxu0 0.0
  %45 = vmatpush1.msra.mxu0 0.0
  %46 = vmatprep.subr.mxu0 0.0
  %47 = vmatpush1.msra.mxu0 0.0
  %48 = vmatprep.subr.mxu0 0.0
  %49 = vmatpush1.msra.mxu0 0.0
  %50 = vmatprep.subr.mxu0 0.0
  %51 = vmatpush1.msra.mxu0 0.0
  %52 = vmatprep.subr.mxu0 0.0
  %53 = vmatpush1.msra.mxu0 0.0
  %54 = vmatprep.subr.mxu0 0.0
  %55 = vmatpush1.msra.mxu0 0.0
  %56 = vmatprep.subr.mxu0 0.0
  %57 = vmatpush1.msra.mxu0 0.0
  %58 = vmatprep.subr.mxu0 0.0
  %59 = vmatpush1.msra.mxu0 0.0
  %60 = vmatprep.subr.mxu0 0.0
  %61 = vmatpush1.msra.mxu0 %v30
  %62 = vmatprep.subr.mxu0 0.0
  %63 = vmatpush1.msra.mxu0 %v19
  %64 = vmatprep.subr.mxu0 0.0
  %65 = vmatpush2.msra.mxu0 0.0
  %66 = vmatprep.subr.mxu0 0.0
  %67 = vmatpush2.msra.mxu0 0.0
  %68 = vmatprep.subr.mxu0 0.0
  %69 = vmatpush2.msra.mxu0 0.0
  %70 = vmatprep.subr.mxu0 0.0
  %71 = vmatpush2.msra.mxu0 0.0
  %72 = vmatprep.subr.mxu0 0.0
  %73 = vmatpush2.msra.mxu0 0.0
  %74 = vmatprep.subr.mxu0 0.0
  %75 = vmatpush2.msra.mxu0 0.0
  %76 = vmatprep.subr.mxu0 0.0
  %77 = vmatpush2.msra.mxu0 0.0
  %78 = vmatprep.subr.mxu0 0.0
  %79 = vmatpush2.msra.mxu0 0.0
  %80 = vmatprep.subr.mxu0 0.0
  %81 = vmatpush2.msra.mxu0 0.0
  %82 = vmatprep.subr.mxu0 0.0
  %83 = vmatpush2.msra.mxu0 0.0
  %84 = vmatprep.subr.mxu0 0.0
  %85 = vmatpush2.msra.mxu0 0.0
  %86 = vmatprep.subr.mxu0 0.0
  %87 = vmatpush2.msra.mxu0 0.0
  %88 = vmatprep.subr.mxu0 0.0
  %89 = vmatpush2.msra.mxu0 0.0
  %90 = vmatprep.subr.mxu0 0.0
  %91 = vmatpush2.msra.mxu0 0.0
  %92 = vmatprep.subr.mxu0 0.0
  %93 = vmatpush2.msra.mxu0 0.0
  %94 = vmatprep.subr.mxu0 0.0
  %95 = vmatpush2.msra.mxu0 0.0
  %96 = vmatprep.mubr.f32.mxu0 0.0
  %97 = vmatmul.mubr.f32.gmra.mxu0 %v23
  %v98 = vpop.f32.mrf.mxu0
  %v99 = vadd.f32 0.0, %v98
  %v100 = vpop.f32.mrf.mxu0
  %101 = vmatprep.mubr.f32.mxu0 0.0
  %102 = vmatmul.mubr.f32.gmra.mxu0 %v26
  %v103 = vpop.f32.mrf.mxu0
  %v104 = vadd.f32 0.0, %v103
  %v105 = vpop.f32.mrf.mxu0
  %106 = vdwg.mxu0
  %v107 = vld [vmem:[%s3] sm:$0xff]
  %v108 = vld [vmem:[%s3 + $0x8] sm:$0x3]
  %v109 = vld [vmem:[%s2] sm:$0x1]
  %v111 = vlaneseq
  %v112 = vshrl.u32 %v111, 7
  %v113 = vsub.s32 0, %v112
  %v114 = vrot.slane %v109, %v113
  %v116 = vadd.f32 %v107, %v114
  %v117 = vadd.f32 %v108, %v114
  %v118 = vadd.f32 %v116, %v99
  %v119 = vadd.f32 %v117, %v104
  %vm120 = vcmask 818176
  %121 = vst.msk [vmem:[%s4] sm:$0xff] %vm120, %v118
  %vm122 = vcmask 812032
  %123 = vst.msk [vmem:[%s4 + $0x8] sm:$0x3] %vm122, %v119
  // Predicated region
  $region18: #{linear_add.1} parent=0 // pred_check
    _
  $region19: #{linear_add.1} parent=0 // pred_check_branch
    %125 = sbr.rel (0) target = $region21
  $region20: #{linear_add.1} parent=0 // pred_region
    _
  $region21: #{linear_add.1} parent=0 // pred_fallthru
    _
  // Predicated region
  $region22: #{linear_add.1} parent=0 // pred_check
    _
  $region23: #{linear_add.1} parent=0 // pred_check_branch
    %127 = sbr.rel (0) target = $region25
  $region24: #{linear_add.1} parent=0 // pred_region
    _
  $region25: #{linear_add.1} parent=0 // pred_fallthru
    _

</llo_original>
